<compile_context>
chip_gen: v7x
topology: tpu7x:2x2x1
jax: 0.10.0
libtpu: 0.0.40
codegen_flags: <defaults>
</compile_context>

<pallas_src>
from functools import partial

import jax
import jax.numpy as jnp
from jax.experimental import pallas as pl
from jax.experimental.pallas import tpu as pltpu

B, C, H, W = 2, 8, 16, 16  # Cin == Cout so the identity skip (projection=None) is valid


def resblock_kernel(x_ref, w1_ref, b1_ref, w2_ref, b2_ref, o_ref):
    """Whole batch in one step, fully lane-dense.

    x_ref  : (B, H, W*C) f32   lane-packed input (also the residual)
    w1_ref : (3*W*C, W*C)      conv1 row-conv weight (MXU operand dtype)
    b1_ref : (1, W*C) f32
    w2_ref : (3*W*C, W*C)      conv2 row-conv weight
    b2_ref : (1, W*C) f32
    o_ref  : (B, H, W*C) f32   lane-dense output slab
    """
    Bn, Hh, WC = o_ref.shape
    M = Bn * Hh
    mxu = w1_ref.dtype

    x_f32 = x_ref[...].reshape(M, WC)            # residual, stays f32

    # Per-image top/bottom row masks for the vertical ('SAME') halo.
    row = jax.lax.broadcasted_iota(jnp.int32, (M, 1), 0)
    is_top = (row % Hh) == 0
    is_bot = (row % Hh) == (Hh - 1)

    def band(src):
        """(M, WC) -> (M, 3*WC): [row-1, row, row+1] windows, zero outside each
        image.  Sublane shifts + 128-aligned lane concat; stays in registers."""
        z = jnp.zeros((1, WC), src.dtype)
        up = jnp.concatenate([z, src[:M - 1, :]], axis=0)     # row m <- src[m-1]
        dn = jnp.concatenate([src[1:, :], z], axis=0)         # row m <- src[m+1]
        up = jnp.where(is_top, jnp.zeros_like(up), up)        # no leak across images
        dn = jnp.where(is_bot, jnp.zeros_like(dn), dn)
        return jnp.concatenate([up, src, dn], axis=-1)        # (M, 3*WC)

    # ---- conv1 + bias + ReLU : one MXU matmul, f32 accumulation --------------
    lhs1 = band(x_f32.astype(mxu))
    h = jnp.dot(lhs1, w1_ref[...], preferred_element_type=jnp.float32)
    h = jnp.maximum(h + b1_ref[...], 0.0)                     # (M, WC) f32

    # ---- conv2 : same in-register band construction, one MXU matmul ----------
    lhs2 = band(h.astype(mxu))
    out = jnp.dot(lhs2, w2_ref[...], preferred_element_type=jnp.float32)

    # ---- bias + identity skip (projection is None); full-lane store ----------
    # TODO(synk): stochastic depth (survival_rate < 1.0) is a training-time
    # random drop; with survival_rate == 1.0 it is the identity and not emitted.
    out = out + b2_ref[...] + x_f32
    o_ref[...] = out.reshape(Bn, Hh, WC).astype(o_ref.dtype)


def _row_conv_weight(w, out_w):
    """Expand a 3x3 HWIO conv weight into a dense (3*out_w*Cin, out_w*Cout)
    matrix for the row-conv formulation on an UNPADDED (in x) source:
        out[y, x*Cout+co] = sum_{ky,xs,ci} M[(ky,xs,ci),(x,co)] * src_v[y+ky, xs, ci]
    where src_v is the source with one zero row above/below and
    M[(ky,xs,ci),(x,co)] = w[ky, xs - x + 1, ci, co]  (0 if xs-x+1 outside [0,3)),
    which also realizes the horizontal 'SAME' padding.
    """
    kh, kw, cin, cout = w.shape
    ky = jnp.arange(kh)[:, None, None, None, None]
    xs = jnp.arange(out_w)[None, :, None, None, None]
    ci = jnp.arange(cin)[None, None, :, None, None]
    xo = jnp.arange(out_w)[None, None, None, :, None]
    co = jnp.arange(cout)[None, None, None, None, :]
    kx = xs - xo + 1
    vals = w[ky, jnp.clip(kx, 0, kw - 1), ci, co]             # (3, out_w, cin, out_w, cout)
    vals = jnp.where((kx >= 0) & (kx < kw), vals, 0.0)
    return vals.reshape(kh * out_w * cin, out_w * cout)


@partial(jax.jit, static_argnames=("mxu_dtype",))
def resblock_forward(x_nchw, w1, b1, w2, b2, mxu_dtype=jnp.bfloat16):
    """x_nchw: (B, C, H, W) f32.  w1/w2: (3, 3, Cin, Cout) HWIO.  b1/b2: (Cout,)."""
    x = jnp.transpose(x_nchw, (0, 2, 3, 1))                   # NHWC
    Bn, Hh, Ww, Cin = x.shape
    Cout = w2.shape[3]
    assert Cin == Cout, "identity skip (projection=None) requires Cin == Cout"
    WC = Ww * Cout
    assert WC % 128 == 0, "lane-dense layout assumes W*C a multiple of 128"

    x_lp = x.reshape(Bn, Hh, WC)                              # lane-packed, no pad/concat
    w1big = _row_conv_weight(w1, Ww).astype(mxu_dtype)        # (3*W*C, W*C) = (384, 128)
    w2big = _row_conv_weight(w2, Ww).astype(mxu_dtype)
    K = w1big.shape[0]
    b1_lp = jnp.tile(b1, Ww).reshape(1, WC).astype(jnp.float32)
    b2_lp = jnp.tile(b2, Ww).reshape(1, WC).astype(jnp.float32)

    out_lp = pl.pallas_call(
        resblock_kernel,
        out_shape=jax.ShapeDtypeStruct((Bn, Hh, WC), x.dtype),
        grid_spec=pltpu.PrefetchScalarGridSpec(
            num_scalar_prefetch=0,
            grid=(1,),                                        # one fat step, M = B*H
            in_specs=[
                pl.BlockSpec((Bn, Hh, WC), lambda i: (0, 0, 0)),
                pl.BlockSpec((K, WC), lambda i: (0, 0)),
                pl.BlockSpec((1, WC), lambda i: (0, 0)),
                pl.BlockSpec((K, WC), lambda i: (0, 0)),
                pl.BlockSpec((1, WC), lambda i: (0, 0)),
            ],
            out_specs=pl.BlockSpec((Bn, Hh, WC), lambda i: (0, 0, 0)),
        ),
        compiler_params=pltpu.CompilerParams(dimension_semantics=("arbitrary",)),
    )(x_lp, w1big, b1_lp, w2big, b2_lp)

    out = out_lp.reshape(Bn, Hh, Ww, Cout)
    return jnp.transpose(out, (0, 3, 1, 2))                   # back to NCHW


def ref_forward(x_nchw, w1, b1, w2, b2, mxu_dtype=jnp.bfloat16):
    """Pure-JAX reference with matching MXU-operand precision (f32 accumulation)."""
    x = jnp.transpose(x_nchw, (0, 2, 3, 1))
    dn = ('NHWC', 'HWIO', 'NHWC')

    def conv(a, w):
        return jax.lax.conv_general_dilated(
            a.astype(mxu_dtype), w.astype(mxu_dtype), (1, 1), 'SAME',
            dimension_numbers=dn, preferred_element_type=jnp.float32)

    h = jnp.maximum(conv(x, w1) + b1, 0.0)
    o = conv(h, w2) + b2 + x                                  # identity skip
    return jnp.transpose(o, (0, 3, 1, 2))


if __name__ == "__main__":
    key = jax.random.PRNGKey(0)
    kx, kw1, kb1, kw2, kb2 = jax.random.split(key, 5)
    x = jax.random.normal(kx, (B, C, H, W), jnp.float32)

    fan_in = C * 3 * 3
    w1 = jax.random.normal(kw1, (3, 3, C, C), jnp.float32) * (2.0 / fan_in) ** 0.5
    b1 = jax.random.normal(kb1, (C,), jnp.float32) * 0.01
    w2 = jax.random.normal(kw2, (3, 3, C, C), jnp.float32) * (2.0 / fan_in) ** 0.5
    b2 = jax.random.normal(kb2, (C,), jnp.float32) * 0.01

    # Exact path: f32 MXU operands vs f32 reference.
    out_f32 = jax.block_until_ready(
        resblock_forward(x, w1, b1, w2, b2, mxu_dtype=jnp.float32))
    ref_f32 = jax.block_until_ready(ref_forward(x, w1, b1, w2, b2, mxu_dtype=jnp.float32))
    assert out_f32.shape == (B, C, H, W), out_f32.shape
    assert jnp.allclose(out_f32, ref_f32, atol=1e-4, rtol=1e-4), \
        float(jnp.abs(out_f32 - ref_f32).max())

    # Default fast path: bf16 MXU operands, f32 accumulation (v5e/v6e/v7x);
    # the reference uses the same operand precision, only summation order differs.
    out_bf = jax.block_until_ready(resblock_forward(x, w1, b1, w2, b2))
    ref_bf = jax.block_until_ready(ref_forward(x, w1, b1, w2, b2, mxu_dtype=jnp.bfloat16))
    assert jnp.allclose(out_bf, ref_bf, atol=5e-2, rtol=5e-2), \
        float(jnp.abs(out_bf - ref_bf).max())

    print("KERNEL_OK")
</pallas_src>

<mosaic_0001>
module attributes {stable_mosaic.version = 11 : i64} {
  func.func @resblock_kernel(%arg0: i32, %arg1: memref<2x16x128xf32, #tpu.memory_space<vmem>>, %arg2: memref<384x128xf32, #tpu.memory_space<vmem>>, %arg3: memref<1x128xf32, #tpu.memory_space<vmem>>, %arg4: memref<384x128xf32, #tpu.memory_space<vmem>>, %arg5: memref<1x128xf32, #tpu.memory_space<vmem>>, %arg6: memref<2x16x128xf32, #tpu.memory_space<vmem>>) attributes {dimension_semantics = [#tpu.dimension_semantics<arbitrary>], iteration_bounds = array<i64: 1>, scalar_prefetch = 0 : i64, scratch_operands = 0 : i64, tpu.core_type = #tpu.core_type<tc>, window_params = [{pipeline_mode = #tpu.pipeline_mode<synchronous>, transform_indices = @transform_0, window_bounds = array<i64: 2, 16, 128>}, {pipeline_mode = #tpu.pipeline_mode<synchronous>, transform_indices = @transform_1, window_bounds = array<i64: 384, 128>}, {pipeline_mode = #tpu.pipeline_mode<synchronous>, transform_indices = @transform_2, window_bounds = array<i64: 1, 128>}, {pipeline_mode = #tpu.pipeline_mode<synchronous>, transform_indices = @transform_3, window_bounds = array<i64: 384, 128>}, {pipeline_mode = #tpu.pipeline_mode<synchronous>, transform_indices = @transform_4, window_bounds = array<i64: 1, 128>}, {pipeline_mode = #tpu.pipeline_mode<synchronous>, transform_indices = @transform_5, window_bounds = array<i64: 2, 16, 128>}]} {
    %c0 = arith.constant 0 : index
    %c0_0 = arith.constant 0 : index
    %c0_1 = arith.constant 0 : index
    %0 = vector.load %arg1[%c0, %c0_0, %c0_1] : memref<2x16x128xf32, #tpu.memory_space<vmem>>, vector<2x16x128xf32>
    %1 = vector.shape_cast %0 : vector<2x16x128xf32> to vector<32x128xf32>
    %2 = tpu.iota {dimensions = array<i32: 0>} : vector<32x1xi32>
    %c16_i32 = arith.constant 16 : i32
    %c0_i32 = arith.constant 0 : i32
    %3 = arith.cmpi eq, %c16_i32, %c0_i32 : i32
    %c1_i32 = arith.constant 1 : i32
    %4 = arith.select %3, %c1_i32, %c16_i32 : i32
    %5 = vector.broadcast %4 : i32 to vector<32x1xi32>
    %6 = arith.remsi %2, %5 : vector<32x1xi32>
    %c0_i32_2 = arith.constant 0 : i32
    %7 = vector.broadcast %c0_i32_2 : i32 to vector<32x1xi32>
    %8 = arith.cmpi ne, %6, %7 : vector<32x1xi32>
    %c0_i32_3 = arith.constant 0 : i32
    %9 = vector.broadcast %c0_i32_3 : i32 to vector<32x1xi32>
    %10 = arith.cmpi slt, %6, %9 : vector<32x1xi32>
    %c0_i32_4 = arith.constant 0 : i32
    %11 = arith.cmpi slt, %4, %c0_i32_4 : i32
    %12 = vector.broadcast %11 : i1 to vector<32x1xi1>
    %13 = vector.broadcast %12 : vector<32x1xi1> to vector<32x1xi1>
    %14 = arith.xori %10, %13 : vector<32x1xi1>
    %15 = arith.andi %14, %8 : vector<32x1xi1>
    %16 = vector.broadcast %4 : i32 to vector<32x1xi32>
    %17 = arith.addi %6, %16 : vector<32x1xi32>
    %18 = arith.select %15, %17, %6 : vector<32x1xi1>, vector<32x1xi32>
    %c0_i32_5 = arith.constant 0 : i32
    %19 = vector.broadcast %c0_i32_5 : i32 to vector<32x1xi32>
    %20 = arith.cmpi eq, %18, %19 : vector<32x1xi32>
    %c16_i32_6 = arith.constant 16 : i32
    %c0_i32_7 = arith.constant 0 : i32
    %21 = arith.cmpi eq, %c16_i32_6, %c0_i32_7 : i32
    %c1_i32_8 = arith.constant 1 : i32
    %22 = arith.select %21, %c1_i32_8, %c16_i32_6 : i32
    %23 = vector.broadcast %22 : i32 to vector<32x1xi32>
    %24 = arith.remsi %2, %23 : vector<32x1xi32>
    %c0_i32_9 = arith.constant 0 : i32
    %25 = vector.broadcast %c0_i32_9 : i32 to vector<32x1xi32>
    %26 = arith.cmpi ne, %24, %25 : vector<32x1xi32>
    %c0_i32_10 = arith.constant 0 : i32
    %27 = vector.broadcast %c0_i32_10 : i32 to vector<32x1xi32>
    %28 = arith.cmpi slt, %24, %27 : vector<32x1xi32>
    %c0_i32_11 = arith.constant 0 : i32
    %29 = arith.cmpi slt, %22, %c0_i32_11 : i32
    %30 = vector.broadcast %29 : i1 to vector<32x1xi1>
    %31 = vector.broadcast %30 : vector<32x1xi1> to vector<32x1xi1>
    %32 = arith.xori %28, %31 : vector<32x1xi1>
    %33 = arith.andi %32, %26 : vector<32x1xi1>
    %34 = vector.broadcast %22 : i32 to vector<32x1xi32>
    %35 = arith.addi %24, %34 : vector<32x1xi32>
    %36 = arith.select %33, %35, %24 : vector<32x1xi1>, vector<32x1xi32>
    %c15_i32 = arith.constant 15 : i32
    %37 = vector.broadcast %c15_i32 : i32 to vector<32x1xi32>
    %38 = arith.cmpi eq, %36, %37 : vector<32x1xi32>
    %cst = arith.constant 0.000000e+00 : f32
    %39 = vector.broadcast %cst : f32 to vector<1x128xf32>
    %40 = vector.extract_strided_slice %1 {offsets = [0, 0], sizes = [31, 128], strides = [1, 1]} : vector<32x128xf32> to vector<31x128xf32>
    %41 = tpu.concatenate %39, %40 in 0 : vector<1x128xf32>, vector<31x128xf32> -> vector<32x128xf32>
    %42 = vector.extract_strided_slice %1 {offsets = [1, 0], sizes = [31, 128], strides = [1, 1]} : vector<32x128xf32> to vector<31x128xf32>
    %43 = tpu.concatenate %42, %39 in 0 : vector<31x128xf32>, vector<1x128xf32> -> vector<32x128xf32>
    %cst_12 = arith.constant 0.000000e+00 : f32
    %44 = vector.broadcast %cst_12 : f32 to vector<32x128xf32>
    %45 = vector.shape_cast %20 : vector<32x1xi1> to vector<32x1xi1>
    %46 = vector.broadcast %45 : vector<32x1xi1> to vector<32x128xi1>
    %47 = arith.select %46, %44, %41 : vector<32x128xi1>, vector<32x128xf32>
    %cst_13 = arith.constant 0.000000e+00 : f32
    %48 = vector.broadcast %cst_13 : f32 to vector<32x128xf32>
    %49 = vector.shape_cast %38 : vector<32x1xi1> to vector<32x1xi1>
    %50 = vector.broadcast %49 : vector<32x1xi1> to vector<32x128xi1>
    %51 = arith.select %50, %48, %43 : vector<32x128xi1>, vector<32x128xf32>
    %52 = tpu.concatenate %47, %1, %51 in 1 : vector<32x128xf32>, vector<32x128xf32>, vector<32x128xf32> -> vector<32x384xf32>
    %c0_14 = arith.constant 0 : index
    %c0_15 = arith.constant 0 : index
    %53 = vector.load %arg2[%c0_14, %c0_15] : memref<384x128xf32, #tpu.memory_space<vmem>>, vector<384x128xf32>
    %cst_16 = arith.constant dense<0.000000e+00> : vector<32x128xf32>
    %54 = tpu.matmul %52, %53, %cst_16 {dimension_numbers = #tpu.dot_dimension_numbers<[1], [0], [0], [1], [0, 0, 1, 1], [], []>} : vector<32x384xf32>, vector<384x128xf32>, vector<32x128xf32> -> vector<32x128xf32>
    %c0_17 = arith.constant 0 : index
    %c0_18 = arith.constant 0 : index
    %55 = vector.load %arg3[%c0_17, %c0_18] : memref<1x128xf32, #tpu.memory_space<vmem>>, vector<1x128xf32>
    %56 = vector.broadcast %55 : vector<1x128xf32> to vector<32x128xf32>
    %57 = arith.addf %54, %56 : vector<32x128xf32>
    %cst_19 = arith.constant 0.000000e+00 : f32
    %58 = vector.broadcast %cst_19 : f32 to vector<32x128xf32>
    %59 = arith.maximumf %57, %58 : vector<32x128xf32>
    %cst_20 = arith.constant 0.000000e+00 : f32
    %60 = vector.broadcast %cst_20 : f32 to vector<1x128xf32>
    %61 = vector.extract_strided_slice %59 {offsets = [0, 0], sizes = [31, 128], strides = [1, 1]} : vector<32x128xf32> to vector<31x128xf32>
    %62 = tpu.concatenate %60, %61 in 0 : vector<1x128xf32>, vector<31x128xf32> -> vector<32x128xf32>
    %63 = vector.extract_strided_slice %59 {offsets = [1, 0], sizes = [31, 128], strides = [1, 1]} : vector<32x128xf32> to vector<31x128xf32>
    %64 = tpu.concatenate %63, %60 in 0 : vector<31x128xf32>, vector<1x128xf32> -> vector<32x128xf32>
    %cst_21 = arith.constant 0.000000e+00 : f32
    %65 = vector.broadcast %cst_21 : f32 to vector<32x128xf32>
    %66 = vector.shape_cast %20 : vector<32x1xi1> to vector<32x1xi1>
    %67 = vector.broadcast %66 : vector<32x1xi1> to vector<32x128xi1>
    %68 = arith.select %67, %65, %62 : vector<32x128xi1>, vector<32x128xf32>
    %cst_22 = arith.constant 0.000000e+00 : f32
    %69 = vector.broadcast %cst_22 : f32 to vector<32x128xf32>
    %70 = vector.shape_cast %38 : vector<32x1xi1> to vector<32x1xi1>
    %71 = vector.broadcast %70 : vector<32x1xi1> to vector<32x128xi1>
    %72 = arith.select %71, %69, %64 : vector<32x128xi1>, vector<32x128xf32>
    %73 = tpu.concatenate %68, %59, %72 in 1 : vector<32x128xf32>, vector<32x128xf32>, vector<32x128xf32> -> vector<32x384xf32>
    %c0_23 = arith.constant 0 : index
    %c0_24 = arith.constant 0 : index
    %74 = vector.load %arg4[%c0_23, %c0_24] : memref<384x128xf32, #tpu.memory_space<vmem>>, vector<384x128xf32>
    %cst_25 = arith.constant dense<0.000000e+00> : vector<32x128xf32>
    %75 = tpu.matmul %73, %74, %cst_25 {dimension_numbers = #tpu.dot_dimension_numbers<[1], [0], [0], [1], [0, 0, 1, 1], [], []>} : vector<32x384xf32>, vector<384x128xf32>, vector<32x128xf32> -> vector<32x128xf32>
    %c0_26 = arith.constant 0 : index
    %c0_27 = arith.constant 0 : index
    %76 = vector.load %arg5[%c0_26, %c0_27] : memref<1x128xf32, #tpu.memory_space<vmem>>, vector<1x128xf32>
    %77 = vector.broadcast %76 : vector<1x128xf32> to vector<32x128xf32>
    %78 = arith.addf %75, %77 : vector<32x128xf32>
    %79 = arith.addf %78, %1 : vector<32x128xf32>
    %80 = vector.shape_cast %79 : vector<32x128xf32> to vector<2x16x128xf32>
    %c0_28 = arith.constant 0 : index
    %c0_29 = arith.constant 0 : index
    %c0_30 = arith.constant 0 : index
    %81 = vector.load %arg6[%c0_28, %c0_29, %c0_30] : memref<2x16x128xf32, #tpu.memory_space<vmem>>, vector<2x16x128xf32>
    tpu.vector_store %arg6[%c0_28, %c0_29, %c0_30], %80 {strides = array<i32>} : memref<2x16x128xf32, #tpu.memory_space<vmem>>, vector<2x16x128xf32>,
    return
  }
  func.func @transform_0(%arg0: i32) -> (i32, i32, i32) {
    %c0_i32 = arith.constant 0 : i32
    %c0_i32_0 = arith.constant 0 : i32
    %c0_i32_1 = arith.constant 0 : i32
    %c0_i32_2 = arith.constant 0 : i32
    return %c0_i32, %c0_i32_0, %c0_i32_1 : i32, i32, i32
  }
  func.func @transform_1(%arg0: i32) -> (i32, i32) {
    %c0_i32 = arith.constant 0 : i32
    %c0_i32_0 = arith.constant 0 : i32
    %c0_i32_1 = arith.constant 0 : i32
    return %c0_i32, %c0_i32_0 : i32, i32
  }
  func.func @transform_2(%arg0: i32) -> (i32, i32) {
    %c0_i32 = arith.constant 0 : i32
    %c0_i32_0 = arith.constant 0 : i32
    %c0_i32_1 = arith.constant 0 : i32
    return %c0_i32, %c0_i32_0 : i32, i32
  }
  func.func @transform_3(%arg0: i32) -> (i32, i32) {
    %c0_i32 = arith.constant 0 : i32
    %c0_i32_0 = arith.constant 0 : i32
    %c0_i32_1 = arith.constant 0 : i32
    return %c0_i32, %c0_i32_0 : i32, i32
  }
  func.func @transform_4(%arg0: i32) -> (i32, i32) {
    %c0_i32 = arith.constant 0 : i32
    %c0_i32_0 = arith.constant 0 : i32
    %c0_i32_1 = arith.constant 0 : i32
    return %c0_i32, %c0_i32_0 : i32, i32
  }
  func.func @transform_5(%arg0: i32) -> (i32, i32, i32) {
    %c0_i32 = arith.constant 0 : i32
    %c0_i32_0 = arith.constant 0 : i32
    %c0_i32_1 = arith.constant 0 : i32
    %c0_i32_2 = arith.constant 0 : i32
    return %c0_i32, %c0_i32_0, %c0_i32_1 : i32, i32, i32
  }
}

</mosaic_0001>

<llo_original>
// kernel: tile.13
$region0: #{tile.13}
  #allocation0 [shape = 's32[1]{0}', space=sflag, size = 0x4, scoped, tag = 'scoped memory for tile.13']
  %s0 = inlined_call_operand.vmem [shape: f32[8], index: 0, kind: input, shape index: {}]
  %s1 = inlined_call_operand.vmem [shape: f32[16,8], index: 1, kind: output, shape index: {}]
  // Predicated region
  $region2: #{tile.13} parent=0 // pred_check
    _
  $region3: #{tile.13} parent=0 // pred_check_branch
    %3 = sbr.rel (0) target = $region5
  $region4: #{tile.13} parent=0 // pred_region
    _
  $region5: #{tile.13} parent=0 // pred_fallthru
    _
  %v4 = vld [vmem:[%s0] ss:$0 sm:$0xff]
  %5 = vst [vmem:[%s1] sm:$0xff] %v4
  %s6 = scalar_lea.vmem %s1, 8
  %7 = vst [vmem:[%s6] sm:$0xff] %v4

// kernel: tile.14
$region0: #{tile.14}
  %s0 = inlined_call_operand.vmem [shape: f32[16,8], index: 0, kind: input, shape index: {}]
  %s1 = inlined_call_operand.vmem [shape: f32[1,128], index: 1, kind: output, shape index: {}]
  $region1: #{tile.14} parent=0
    #allocation0 [shape = 'u8[4096]{0}', space=vmem, size = 0x1000, scoped, tag = 'scoped mem for output reshape']
    %v2 = vld [vmem:[%s0] sm:$0x1]
    %vm3 = vcmask 64512
    %4 = vst.msk [vmem:[#allocation0] sm:$0x1] %vm3, %v2
    %s5 = scalar_lea.vmem %s0, 15
    %v6 = vld [vmem:[%s5] sm:$0x1]
    %7 = vrot.lane.b32.xlu0 %v6, 120
    %v8 = vpop.permute.xlu0 %7
    %vm9 = vcmask 1048512
    %10 = vst.msk [vmem:[#allocation0] sm:$0x1] %vm9, %v8
    %s11 = scalar_lea.vmem %s0, 14
    %v12 = vld [vmem:[%s11] sm:$0x1]
    %13 = vrot.lane.b32.xlu0 %v12, 112
    %v14 = vpop.permute.xlu0 %13
    %vm15 = vcmask 982912
    %16 = vst.msk [vmem:[#allocation0] sm:$0x1] %vm15, %v14
    %s17 = scalar_lea.vmem %s0, 13
    %v18 = vld [vmem:[%s17] sm:$0x1]
    %19 = vrot.lane.b32.xlu0 %v18, 104
    %v20 = vpop.permute.xlu0 %19
    %vm21 = vcmask 917312
    %22 = vst.msk [vmem:[#allocation0] sm:$0x1] %vm21, %v20
    %s23 = scalar_lea.vmem %s0, 12
    %v24 = vld [vmem:[%s23] sm:$0x1]
    %25 = vrot.lane.b32.xlu0 %v24, 96
    %v26 = vpop.permute.xlu0 %25
    %vm27 = vcmask 851712
    %28 = vst.msk [vmem:[#allocation0] sm:$0x1] %vm27, %v26
    %s29 = scalar_lea.vmem %s0, 11
    %v30 = vld [vmem:[%s29] sm:$0x1]
    %31 = vrot.lane.b32.xlu0 %v30, 88
    %v32 = vpop.permute.xlu0 %31
    %vm33 = vcmask 786112
    %34 = vst.msk [vmem:[#allocation0] sm:$0x1] %vm33, %v32
    %s35 = scalar_lea.vmem %s0, 10
    %v36 = vld [vmem:[%s35] sm:$0x1]
    %37 = vrot.lane.b32.xlu0 %v36, 80
    %v38 = vpop.permute.xlu0 %37
    %vm39 = vcmask 720512
    %40 = vst.msk [vmem:[#allocation0] sm:$0x1] %vm39, %v38
    %s41 = scalar_lea.vmem %s0, 9
    %v42 = vld [vmem:[%s41] sm:$0x1]
    %43 = vrot.lane.b32.xlu0 %v42, 72
    %v44 = vpop.permute.xlu0 %43
    %vm45 = vcmask 654912
    %46 = vst.msk [vmem:[#allocation0] sm:$0x1] %vm45, %v44
    %s47 = scalar_lea.vmem %s0, 8
    %v48 = vld [vmem:[%s47] sm:$0x1]
    %49 = vrot.lane.b32.xlu0 %v48, 64
    %v50 = vpop.permute.xlu0 %49
    %vm51 = vcmask 589312
    %52 = vst.msk [vmem:[#allocation0] sm:$0x1] %vm51, %v50
    %s53 = scalar_lea.vmem %s0, 7
    %v54 = vld [vmem:[%s53] sm:$0x1]
    %55 = vrot.lane.b32.xlu0 %v54, 56
    %v56 = vpop.permute.xlu0 %55
    %vm57 = vcmask 523712
    %58 = vst.msk [vmem:[#allocation0] sm:$0x1] %vm57, %v56
    %s59 = scalar_lea.vmem %s0, 6
    %v60 = vld [vmem:[%s59] sm:$0x1]
    %61 = vrot.lane.b32.xlu0 %v60, 48
    %v62 = vpop.permute.xlu0 %61
    %vm63 = vcmask 458112
    %64 = vst.msk [vmem:[#allocation0] sm:$0x1] %vm63, %v62
    %s65 = scalar_lea.vmem %s0, 5
    %v66 = vld [vmem:[%s65] sm:$0x1]
    %67 = vrot.lane.b32.xlu0 %v66, 40
    %v68 = vpop.permute.xlu0 %67
    %vm69 = vcmask 392512
    %70 = vst.msk [vmem:[#allocation0] sm:$0x1] %vm69, %v68
    %s71 = scalar_lea.vmem %s0, 4
    %v72 = vld [vmem:[%s71] sm:$0x1]
    %73 = vrot.lane.b32.xlu0 %v72, 32
    %v74 = vpop.permute.xlu0 %73
    %vm75 = vcmask 326912
    %76 = vst.msk [vmem:[#allocation0] sm:$0x1] %vm75, %v74
    %s77 = scalar_lea.vmem %s0, 3
    %v78 = vld [vmem:[%s77] sm:$0x1]
    %79 = vrot.lane.b32.xlu0 %v78, 24
    %v80 = vpop.permute.xlu0 %79
    %vm81 = vcmask 261312
    %82 = vst.msk [vmem:[#allocation0] sm:$0x1] %vm81, %v80
    %s83 = scalar_lea.vmem %s0, 2
    %v84 = vld [vmem:[%s83] sm:$0x1]
    %85 = vrot.lane.b32.xlu0 %v84, 16
    %v86 = vpop.permute.xlu0 %85
    %vm87 = vcmask 195712
    %88 = vst.msk [vmem:[#allocation0] sm:$0x1] %vm87, %v86
    %s89 = scalar_lea.vmem %s0, 1
    %v90 = vld [vmem:[%s89] sm:$0x1]
    %91 = vrot.lane.b32.xlu0 %v90, 8
    %v92 = vpop.permute.xlu0 %91
    %vm93 = vcmask 130112
    %94 = vst.msk [vmem:[#allocation0] sm:$0x1] %vm93, %v92
    %s96 = sshllo.u32 0, 1
    %v98 = vld [vmem:[#allocation0] sm:%s96]
    %s99 = sshllo.u32 0, 1
    %100 = vst [vmem:[%s1] sm:%s99] %v98

// kernel: resblock_forward.1
$region0: #{resblock_forward.1}
  #allocation0 [shape = 'u32[]', space=smem, size = 0x4, offset = 0x4, fixed_abs, tag = 'smem constant byte address 0x4 - core index']
  #allocation1 [shape = 'u32[144,128]{1,0:T(1,128)}', space=vmem, size = 0x12000, scoped, tag = 'internal scratch']
  %s0 = inlined_call_operand.vmem [shape: f32[2,16,128], index: 0, kind: input, shape index: {}]
  %s1 = inlined_call_operand.vmem [shape: f32[384,128], index: 1, kind: input, shape index: {}]
  %s2 = inlined_call_operand.vmem [shape: f32[1,128], index: 2, kind: input, shape index: {}]
  %s3 = inlined_call_operand.vmem [shape: f32[384,128], index: 3, kind: input, shape index: {}]
  %s4 = inlined_call_operand.vmem [shape: f32[1,128], index: 4, kind: input, shape index: {}]
  %s5 = inlined_call_operand.vmem [shape: f32[2,16,128], index: 5, kind: output, shape index: {}]
  %s6 = sld [smem:[#allocation0]]
  $region30: #{resblock_forward.1} parent=0
    _
  %s8 = ssub.s32 1, %s6
  %s9 = scalar_select 0, %s8, %s6
  // Predicated region
  $region2: #{resblock_forward.1} parent=0 // pred_check
    _
  $region3: #{resblock_forward.1} parent=0 // pred_check_branch
    %11 = sbr.rel (0) target = $region5
  $region4: #{resblock_forward.1} parent=0 // pred_region
    _
  $region5: #{resblock_forward.1} parent=0 // pred_fallthru
    _
  // Predicated region
  $region6: #{resblock_forward.1} parent=0 // pred_check
    _
  $region7: #{resblock_forward.1} parent=0 // pred_check_branch
    %13 = sbr.rel (0) target = $region9
  $region8: #{resblock_forward.1} parent=0 // pred_region
    _
  $region9: #{resblock_forward.1} parent=0 // pred_fallthru
    _
  // Predicated region
  $region10: #{resblock_forward.1} parent=0 // pred_check
    _
  $region11: #{resblock_forward.1} parent=0 // pred_check_branch
    %15 = sbr.rel (0) target = $region13
  $region12: #{resblock_forward.1} parent=0 // pred_region
    _
  $region13: #{resblock_forward.1} parent=0 // pred_fallthru
    _
  // Predicated region
  $region14: #{resblock_forward.1} parent=0 // pred_check
    _
  $region15: #{resblock_forward.1} parent=0 // pred_check_branch
    %17 = sbr.rel (0) target = $region17
  $region16: #{resblock_forward.1} parent=0 // pred_region
    _
  $region17: #{resblock_forward.1} parent=0 // pred_fallthru
    _
  // Predicated region
  $region18: #{resblock_forward.1} parent=0 // pred_check
    _
  $region19: #{resblock_forward.1} parent=0 // pred_check_branch
    %19 = sbr.rel (0) target = $region21
  $region20: #{resblock_forward.1} parent=0 // pred_region
    _
  $region21: #{resblock_forward.1} parent=0 // pred_fallthru
    _
  %v20 = vld [vmem:[%s0] sm:$0xff]
  %v21 = vld [vmem:[%s0 + $0x8] sm:$0xff]
  %v22 = vld [vmem:[%s0 + $0x10] sm:$0xff]
  %v23 = vld [vmem:[%s0 + $0x18] sm:$0xff]
  %v24 = vlaneseq
  %v25 = vshrl.u32 %v24, 7
  %v26 = vadd.s32 %v25, 8
  %v27 = vadd.s32 %v25, 16
  %v28 = vadd.s32 %v25, 24
  %vm29 = vcmp.lt.s32.totalorder %v25, 0
  %v30 = vsub.s32 0, %v25
  %v31 = vsel %vm29, %v30, %v25
  %v32 = vshrl.u32 %v31, 4
  %v33 = vand.u32 %v31, 15
  %v34 = vsub.s32 0, %v33
  %v35 = vsel %vm29, %v34, %v33
  %vm36 = vcmp.lt.s32.totalorder %v26, 0
  %v37 = vsub.s32 0, %v26
  %v38 = vsel %vm36, %v37, %v26
  %v39 = vshrl.u32 %v38, 4
  %v40 = vand.u32 %v38, 15
  %v41 = vsub.s32 0, %v40
  %v42 = vsel %vm36, %v41, %v40
  %vm43 = vcmp.lt.s32.totalorder %v27, 0
  %v44 = vsub.s32 0, %v27
  %v45 = vsel %vm43, %v44, %v27
  %v46 = vshrl.u32 %v45, 4
  %v47 = vand.u32 %v45, 15
  %v48 = vsub.s32 0, %v47
  %v49 = vsel %vm43, %v48, %v47
  %vm50 = vcmp.lt.s32.totalorder %v28, 0
  %v51 = vsub.s32 0, %v28
  %v52 = vsel %vm50, %v51, %v28
  %v53 = vshrl.u32 %v52, 4
  %v54 = vand.u32 %v52, 15
  %v55 = vsub.s32 0, %v54
  %v56 = vsel %vm50, %v55, %v54
  %vm57 = vcmp.ne.s32.totalorder %v35, 0
  %vm58 = vcmp.ne.s32.totalorder %v42, 0
  %vm59 = vcmp.ne.s32.totalorder %v49, 0
  %vm60 = vcmp.ne.s32.totalorder %v56, 0
  %vm61 = vcmp.lt.s32.totalorder %v35, 0
  %vm62 = vcmp.lt.s32.totalorder %v42, 0
  %vm63 = vcmp.lt.s32.totalorder %v49, 0
  %vm64 = vcmp.lt.s32.totalorder %v56, 0
  %vm65 = vmand %vm61, %vm57
  %vm66 = vmand %vm62, %vm58
  %vm67 = vmand %vm63, %vm59
  %vm68 = vmand %vm64, %vm60
  %v69 = vadd.s32 %v35, 16
  %v70 = vadd.s32 %v42, 16
  %v71 = vadd.s32 %v49, 16
  %v72 = vadd.s32 %v56, 16
  %v73 = vsel %vm65, %v69, %v35
  %v74 = vsel %vm66, %v70, %v42
  %v75 = vsel %vm67, %v71, %v49
  %v76 = vsel %vm68, %v72, %v56
  %vm77 = vcmp.eq.s32.totalorder %v73, 0
  %vm78 = vcmp.eq.s32.totalorder %v74, 0
  %vm79 = vcmp.eq.s32.totalorder %v75, 0
  %vm80 = vcmp.eq.s32.totalorder %v76, 0
  %vm81 = vcmp.eq.s32.totalorder %v73, 15
  %vm82 = vcmp.eq.s32.totalorder %v74, 15
  %vm83 = vcmp.eq.s32.totalorder %v75, 15
  %vm84 = vcmp.eq.s32.totalorder %v76, 15
  %vm89 = vcmask 1040384
  %v90 = vrot.slane %v20, 7
  %v91 = vrot.slane %v21, 7
  %v92 = vsel %vm89, %v90, %v91
  %v93 = vrot.slane %v22, 7
  %v94 = vsel %vm89, %v91, %v93
  %v95 = vrot.slane %v23, 7
  %v96 = vsel %vm89, %v93, %v95
  %v101 = vsel %vm89, 0.0, %v90
  %vm102 = vcmask 1046528
  %v103 = vrot.slane %v20, 1
  %v104 = vrot.slane %v21, 1
  %v105 = vsel %vm102, %v103, %v104
  %v106 = vrot.slane %v22, 1
  %v107 = vsel %vm102, %v104, %v106
  %v108 = vrot.slane %v23, 1
  %v109 = vsel %vm102, %v106, %v108
  %v114 = vsel %vm102, %v108, 0.0
  %v115 = vsel %vm77, 1, 0
  %v116 = vsel %vm78, 1, 0
  %v117 = vsel %vm79, 1, 0
  %v118 = vsel %vm80, 1, 0
  %vm119 = vcmp.eq.s32.totalorder %v115, 1
  %vm120 = vcmp.eq.s32.totalorder %v116, 1
  %vm121 = vcmp.eq.s32.totalorder %v117, 1
  %vm122 = vcmp.eq.s32.totalorder %v118, 1
  %v123 = vsel %vm119, 0.0, %v101
  %v124 = vsel %vm120, 0.0, %v92
  %v125 = vsel %vm121, 0.0, %v94
  %v126 = vsel %vm122, 0.0, %v96
  %v127 = vsel %vm81, 1, 0
  %v128 = vsel %vm82, 1, 0
  %v129 = vsel %vm83, 1, 0
  %v130 = vsel %vm84, 1, 0
  %vm131 = vcmp.eq.s32.totalorder %v127, 1
  %vm132 = vcmp.eq.s32.totalorder %v128, 1
  %vm133 = vcmp.eq.s32.totalorder %v129, 1
  %vm134 = vcmp.eq.s32.totalorder %v130, 1
  %v135 = vsel %vm131, 0.0, %v105
  %v136 = vsel %vm132, 0.0, %v107
  %v137 = vsel %vm133, 0.0, %v109
  %v138 = vsel %vm134, 0.0, %v114
  %v139 = vld [vmem:[%s1] sm:$0xff]
  %v140 = vld [vmem:[%s1 + $0x8] sm:$0xff]
  %v141 = vld [vmem:[%s1 + $0x10] sm:$0xff]
  %v142 = vld [vmem:[%s1 + $0x18] sm:$0xff]
  %v143 = vld [vmem:[%s1 + $0x20] sm:$0xff]
  %v144 = vld [vmem:[%s1 + $0x28] sm:$0xff]
  %v145 = vld [vmem:[%s1 + $0x30] sm:$0xff]
  %v146 = vld [vmem:[%s1 + $0x38] sm:$0xff]
  %v147 = vld [vmem:[%s1 + $0x40] sm:$0xff]
  %v148 = vld [vmem:[%s1 + $0x48] sm:$0xff]
  %v149 = vld [vmem:[%s1 + $0x50] sm:$0xff]
  %v150 = vld [vmem:[%s1 + $0x58] sm:$0xff]
  %v151 = vld [vmem:[%s1 + $0x60] sm:$0xff]
  %v152 = vld [vmem:[%s1 + $0x68] sm:$0xff]
  %v153 = vld [vmem:[%s1 + $0x70] sm:$0xff]
  %v154 = vld [vmem:[%s1 + $0x78] sm:$0xff]
  %v155 = vld [vmem:[%s1 + $0x80] sm:$0xff]
  %v156 = vld [vmem:[%s1 + $0x88] sm:$0xff]
  %v157 = vld [vmem:[%s1 + $0x90] sm:$0xff]
  %v158 = vld [vmem:[%s1 + $0x98] sm:$0xff]
  %v159 = vld [vmem:[%s1 + $0xa0] sm:$0xff]
  %v160 = vld [vmem:[%s1 + $0xa8] sm:$0xff]
  %v161 = vld [vmem:[%s1 + $0xb0] sm:$0xff]
  %v162 = vld [vmem:[%s1 + $0xb8] sm:$0xff]
  %v163 = vld [vmem:[%s1 + $0xc0] sm:$0xff]
  %v164 = vld [vmem:[%s1 + $0xc8] sm:$0xff]
  %v165 = vld [vmem:[%s1 + $0xd0] sm:$0xff]
  %v166 = vld [vmem:[%s1 + $0xd8] sm:$0xff]
  %v167 = vld [vmem:[%s1 + $0xe0] sm:$0xff]
  %v168 = vld [vmem:[%s1 + $0xe8] sm:$0xff]
  %v169 = vld [vmem:[%s1 + $0xf0] sm:$0xff]
  %v170 = vld [vmem:[%s1 + $0xf8] sm:$0xff]
  %v171 = vld [vmem:[%s1 + $0x100] sm:$0xff]
  %v172 = vld [vmem:[%s1 + $0x108] sm:$0xff]
  %v173 = vld [vmem:[%s1 + $0x110] sm:$0xff]
  %v174 = vld [vmem:[%s1 + $0x118] sm:$0xff]
  %v175 = vld [vmem:[%s1 + $0x120] sm:$0xff]
  %v176 = vld [vmem:[%s1 + $0x128] sm:$0xff]
  %v177 = vld [vmem:[%s1 + $0x130] sm:$0xff]
  %v178 = vld [vmem:[%s1 + $0x138] sm:$0xff]
  %v179 = vld [vmem:[%s1 + $0x140] sm:$0xff]
  %v180 = vld [vmem:[%s1 + $0x148] sm:$0xff]
  %v181 = vld [vmem:[%s1 + $0x150] sm:$0xff]
  %v182 = vld [vmem:[%s1 + $0x158] sm:$0xff]
  %v183 = vld [vmem:[%s1 + $0x160] sm:$0xff]
  %v184 = vld [vmem:[%s1 + $0x168] sm:$0xff]
  %v185 = vld [vmem:[%s1 + $0x170] sm:$0xff]
  %v186 = vld [vmem:[%s1 + $0x178] sm:$0xff]
  %v187 = vld [vmem:[%s2] sm:$0x1]
  %v189 = vlaneseq
  %v190 = vshrl.u32 %v189, 7
  %v191 = vsub.s32 0, %v190
  %v192 = vrot.slane %v187, %v191
  %194 = vmatprep.subr.mxu0 0.0
  %195 = vmatpush1.msra.mxu0 %v139
  %196 = vmatprep.subr.mxu0 0.0
  %197 = vmatpush1.msra.mxu0 %v140
  %198 = vmatprep.subr.mxu0 0.0
  %199 = vmatpush1.msra.mxu0 %v141
  %200 = vmatprep.subr.mxu0 0.0
  %201 = vmatpush1.msra.mxu0 %v142
  %202 = vmatprep.subr.mxu0 0.0
  %203 = vmatpush1.msra.mxu0 %v143
  %204 = vmatprep.subr.mxu0 0.0
  %205 = vmatpush1.msra.mxu0 %v144
  %206 = vmatprep.subr.mxu0 0.0
  %207 = vmatpush1.msra.mxu0 %v145
  %208 = vmatprep.subr.mxu0 0.0
  %209 = vmatpush1.msra.mxu0 %v146
  %210 = vmatprep.subr.mxu0 0.0
  %211 = vmatpush1.msra.mxu0 %v147
  %212 = vmatprep.subr.mxu0 0.0
  %213 = vmatpush1.msra.mxu0 %v148
  %214 = vmatprep.subr.mxu0 0.0
  %215 = vmatpush1.msra.mxu0 %v149
  %216 = vmatprep.subr.mxu0 0.0
  %217 = vmatpush1.msra.mxu0 %v150
  %218 = vmatprep.subr.mxu0 0.0
  %219 = vmatpush1.msra.mxu0 %v151
  %220 = vmatprep.subr.mxu0 0.0
  %221 = vmatpush1.msra.mxu0 %v152
  %222 = vmatprep.subr.mxu0 0.0
  %223 = vmatpush1.msra.mxu0 %v153
  %224 = vmatprep.subr.mxu0 0.0
  %225 = vmatpush1.msra.mxu0 %v154
  %226 = vmatprep.subr.mxu0 0.0
  %227 = vmatpush1.msra.mxu0 %v155
  %228 = vmatprep.subr.mxu0 0.0
  %229 = vmatpush1.msra.mxu0 %v156
  %230 = vmatprep.subr.mxu0 0.0
  %231 = vmatpush1.msra.mxu0 %v157
  %232 = vmatprep.subr.mxu0 0.0
  %233 = vmatpush1.msra.mxu0 %v158
  %234 = vmatprep.subr.mxu0 0.0
  %235 = vmatpush1.msra.mxu0 %v159
  %236 = vmatprep.subr.mxu0 0.0
  %237 = vmatpush1.msra.mxu0 %v160
  %238 = vmatprep.subr.mxu0 0.0
  %239 = vmatpush1.msra.mxu0 %v161
  %240 = vmatprep.subr.mxu0 0.0
  %241 = vmatpush1.msra.mxu0 %v162
  %242 = vmatprep.subr.mxu0 0.0
  %243 = vmatpush1.msra.mxu0 %v163
  %244 = vmatprep.subr.mxu0 0.0
  %245 = vmatpush1.msra.mxu0 %v164
  %246 = vmatprep.subr.mxu0 0.0
  %247 = vmatpush1.msra.mxu0 %v165
  %248 = vmatprep.subr.mxu0 0.0
  %249 = vmatpush1.msra.mxu0 %v166
  %250 = vmatprep.subr.mxu0 0.0
  %251 = vmatpush1.msra.mxu0 %v167
  %252 = vmatprep.subr.mxu0 0.0
  %253 = vmatpush1.msra.mxu0 %v168
  %254 = vmatprep.subr.mxu0 0.0
  %255 = vmatpush1.msra.mxu0 %v169
  %256 = vmatprep.subr.mxu0 0.0
  %257 = vmatpush1.msra.mxu0 %v170
  %258 = vmatprep.mubr.f32.mxu0 %v20
  %259 = vmatmul.mubr.f32.gmra.mrb[0].mxu0 %v123
  %v260 = vpop.f32.mrb[0].mxu0
  %v261 = vadd.f32 %v192, %v260
  %v262 = vpop.f32.mrb[0].mxu0
  %263 = vmatprep.mubr.f32.mxu0 %v21
  %264 = vmatmul.mubr.f32.gmra.mrb[0].mxu0 %v124
  %v265 = vpop.f32.mrb[0].mxu0
  %v266 = vadd.f32 %v192, %v265
  %v267 = vpop.f32.mrb[0].mxu0
  %268 = vmatprep.mubr.f32.mxu0 %v22
  %269 = vmatmul.mubr.f32.gmra.mrb[0].mxu0 %v125
  %v270 = vpop.f32.mrb[0].mxu0
  %v271 = vadd.f32 %v192, %v270
  %v272 = vpop.f32.mrb[0].mxu0
  %273 = vmatprep.mubr.f32.mxu0 %v23
  %274 = vmatmul.mubr.f32.gmra.mrb[0].mxu0 %v126
  %v275 = vpop.f32.mrb[0].mxu0
  %v276 = vadd.f32 %v192, %v275
  %v277 = vpop.f32.mrb[0].mxu0
  %278 = vdwg.mxu0
  %279 = vmatprep.subr.mxu0 0.0
  %280 = vmatpush1.msra.mxu0 %v171
  %281 = vmatprep.subr.mxu0 0.0
  %282 = vmatpush1.msra.mxu0 %v172
  %283 = vmatprep.subr.mxu0 0.0
  %284 = vmatpush1.msra.mxu0 %v173
  %285 = vmatprep.subr.mxu0 0.0
  %286 = vmatpush1.msra.mxu0 %v174
  %287 = vmatprep.subr.mxu0 0.0
  %288 = vmatpush1.msra.mxu0 %v175
  %289 = vmatprep.subr.mxu0 0.0
  %290 = vmatpush1.msra.mxu0 %v176
  %291 = vmatprep.subr.mxu0 0.0
  %292 = vmatpush1.msra.mxu0 %v177
  %293 = vmatprep.subr.mxu0 0.0
  %294 = vmatpush1.msra.mxu0 %v178
  %295 = vmatprep.subr.mxu0 0.0
  %296 = vmatpush1.msra.mxu0 %v179
  %297 = vmatprep.subr.mxu0 0.0
  %298 = vmatpush1.msra.mxu0 %v180
  %299 = vmatprep.subr.mxu0 0.0
  %300 = vmatpush1.msra.mxu0 %v181
  %301 = vmatprep.subr.mxu0 0.0
  %302 = vmatpush1.msra.mxu0 %v182
  %303 = vmatprep.subr.mxu0 0.0
  %304 = vmatpush1.msra.mxu0 %v183
  %305 = vmatprep.subr.mxu0 0.0
  %306 = vmatpush1.msra.mxu0 %v184
  %307 = vmatprep.subr.mxu0 0.0
  %308 = vmatpush1.msra.mxu0 %v185
  %309 = vmatprep.subr.mxu0 0.0
  %310 = vmatpush1.msra.mxu0 %v186
  %311 = vmatprep.subr.mxu0 0.0
  %312 = vmatpush1.msra.mxu0 0.0
  %313 = vmatprep.subr.mxu0 0.0
  %314 = vmatpush1.msra.mxu0 0.0
  %315 = vmatprep.subr.mxu0 0.0
  %316 = vmatpush1.msra.mxu0 0.0
  %317 = vmatprep.subr.mxu0 0.0
  %318 = vmatpush1.msra.mxu0 0.0
  %319 = vmatprep.subr.mxu0 0.0
  %320 = vmatpush1.msra.mxu0 0.0
  %321 = vmatprep.subr.mxu0 0.0
  %322 = vmatpush1.msra.mxu0 0.0
  %323 = vmatprep.subr.mxu0 0.0
  %324 = vmatpush1.msra.mxu0 0.0
  %325 = vmatprep.subr.mxu0 0.0
  %326 = vmatpush1.msra.mxu0 0.0
  %327 = vmatprep.subr.mxu0 0.0
  %328 = vmatpush1.msra.mxu0 0.0
  %329 = vmatprep.subr.mxu0 0.0
  %330 = vmatpush1.msra.mxu0 0.0
  %331 = vmatprep.subr.mxu0 0.0
  %332 = vmatpush1.msra.mxu0 0.0
  %333 = vmatprep.subr.mxu0 0.0
  %334 = vmatpush1.msra.mxu0 0.0
  %335 = vmatprep.subr.mxu0 0.0
  %336 = vmatpush1.msra.mxu0 0.0
  %337 = vmatprep.subr.mxu0 0.0
  %338 = vmatpush1.msra.mxu0 0.0
  %339 = vmatprep.subr.mxu0 0.0
  %340 = vmatpush1.msra.mxu0 0.0
  %341 = vmatprep.subr.mxu0 0.0
  %342 = vmatpush1.msra.mxu0 0.0
  %343 = vmatprep.mubr.f32.mxu0 0.0
  %344 = vmatmul.mubr.f32.gmra.mrb[0].mxu0 %v135
  %v345 = vpop.f32.mrb[0].mxu0
  %v346 = vadd.f32 %v261, %v345
  %v347 = vpop.f32.mrb[0].mxu0
  %348 = vmatprep.mubr.f32.mxu0 0.0
  %349 = vmatmul.mubr.f32.gmra.mrb[0].mxu0 %v136
  %v350 = vpop.f32.mrb[0].mxu0
  %v351 = vadd.f32 %v266, %v350
  %v352 = vpop.f32.mrb[0].mxu0
  %353 = vmatprep.mubr.f32.mxu0 0.0
  %354 = vmatmul.mubr.f32.gmra.mrb[0].mxu0 %v137
  %v355 = vpop.f32.mrb[0].mxu0
  %v356 = vadd.f32 %v271, %v355
  %v357 = vpop.f32.mrb[0].mxu0
  %358 = vmatprep.mubr.f32.mxu0 0.0
  %359 = vmatmul.mubr.f32.gmra.mrb[0].mxu0 %v138
  %v360 = vpop.f32.mrb[0].mxu0
  %v361 = vadd.f32 %v276, %v360
  %v362 = vpop.f32.mrb[0].mxu0
  %363 = vdwg.mxu0
  %v364 = vmax.f32 %v346, 0.0
  %v365 = vmax.f32 %v351, 0.0
  %v366 = vmax.f32 %v356, 0.0
  %v367 = vmax.f32 %v361, 0.0
  %v372 = vrot.slane %v364, 7
  %v373 = vrot.slane %v365, 7
  %v374 = vsel %vm89, %v372, %v373
  %v375 = vrot.slane %v366, 7
  %v376 = vsel %vm89, %v373, %v375
  %v377 = vrot.slane %v367, 7
  %v378 = vsel %vm89, %v375, %v377
  %v383 = vsel %vm89, 0.0, %v372
  %v384 = vrot.slane %v364, 1
  %v385 = vrot.slane %v365, 1
  %v386 = vsel %vm102, %v384, %v385
  %v387 = vrot.slane %v366, 1
  %v388 = vsel %vm102, %v385, %v387
  %v389 = vrot.slane %v367, 1
  %v390 = vsel %vm102, %v387, %v389
  %v395 = vsel %vm102, %v389, 0.0
  %v396 = vsel %vm119, 0.0, %v383
  %v397 = vsel %vm120, 0.0, %v374
  %v398 = vsel %vm121, 0.0, %v376
  %v399 = vsel %vm122, 0.0, %v378
  %v400 = vsel %vm131, 0.0, %v386
  %v401 = vsel %vm132, 0.0, %v388
  %v402 = vsel %vm133, 0.0, %v390
  %v403 = vsel %vm134, 0.0, %v395
  %v404 = vld [vmem:[%s3] sm:$0xff]
  %v405 = vld [vmem:[%s3 + $0x8] sm:$0xff]
  %v406 = vld [vmem:[%s3 + $0x10] sm:$0xff]
  %v407 = vld [vmem:[%s3 + $0x18] sm:$0xff]
  %v408 = vld [vmem:[%s3 + $0x20] sm:$0xff]
  %v409 = vld [vmem:[%s3 + $0x28] sm:$0xff]
  %v410 = vld [vmem:[%s3 + $0x30] sm:$0xff]
  %v411 = vld [vmem:[%s3 + $0x38] sm:$0xff]
  %v412 = vld [vmem:[%s3 + $0x40] sm:$0xff]
  %v413 = vld [vmem:[%s3 + $0x48] sm:$0xff]
  %v414 = vld [vmem:[%s3 + $0x50] sm:$0xff]
  %v415 = vld [vmem:[%s3 + $0x58] sm:$0xff]
  %v416 = vld [vmem:[%s3 + $0x60] sm:$0xff]
  %v417 = vld [vmem:[%s3 + $0x68] sm:$0xff]
  %v418 = vld [vmem:[%s3 + $0x70] sm:$0xff]
  %v419 = vld [vmem:[%s3 + $0x78] sm:$0xff]
  %v420 = vld [vmem:[%s3 + $0x80] sm:$0xff]
  %v421 = vld [vmem:[%s3 + $0x88] sm:$0xff]
  %v422 = vld [vmem:[%s3 + $0x90] sm:$0xff]
  %v423 = vld [vmem:[%s3 + $0x98] sm:$0xff]
  %v424 = vld [vmem:[%s3 + $0xa0] sm:$0xff]
  %v425 = vld [vmem:[%s3 + $0xa8] sm:$0xff]
  %v426 = vld [vmem:[%s3 + $0xb0] sm:$0xff]
  %v427 = vld [vmem:[%s3 + $0xb8] sm:$0xff]
  %v428 = vld [vmem:[%s3 + $0xc0] sm:$0xff]
  %v429 = vld [vmem:[%s3 + $0xc8] sm:$0xff]
  %v430 = vld [vmem:[%s3 + $0xd0] sm:$0xff]
  %v431 = vld [vmem:[%s3 + $0xd8] sm:$0xff]
  %v432 = vld [vmem:[%s3 + $0xe0] sm:$0xff]
  %v433 = vld [vmem:[%s3 + $0xe8] sm:$0xff]
  %v434 = vld [vmem:[%s3 + $0xf0] sm:$0xff]
  %v435 = vld [vmem:[%s3 + $0xf8] sm:$0xff]
  %v436 = vld [vmem:[%s3 + $0x100] sm:$0xff]
  %v437 = vld [vmem:[%s3 + $0x108] sm:$0xff]
  %v438 = vld [vmem:[%s3 + $0x110] sm:$0xff]
  %v439 = vld [vmem:[%s3 + $0x118] sm:$0xff]
  %v440 = vld [vmem:[%s3 + $0x120] sm:$0xff]
  %v441 = vld [vmem:[%s3 + $0x128] sm:$0xff]
  %v442 = vld [vmem:[%s3 + $0x130] sm:$0xff]
  %v443 = vld [vmem:[%s3 + $0x138] sm:$0xff]
  %v444 = vld [vmem:[%s3 + $0x140] sm:$0xff]
  %v445 = vld [vmem:[%s3 + $0x148] sm:$0xff]
  %v446 = vld [vmem:[%s3 + $0x150] sm:$0xff]
  %v447 = vld [vmem:[%s3 + $0x158] sm:$0xff]
  %v448 = vld [vmem:[%s3 + $0x160] sm:$0xff]
  %v449 = vld [vmem:[%s3 + $0x168] sm:$0xff]
  %v450 = vld [vmem:[%s3 + $0x170] sm:$0xff]
  %v451 = vld [vmem:[%s3 + $0x178] sm:$0xff]
  %v452 = vld [vmem:[%s4] sm:$0x1]
  %v454 = vlaneseq
  %v455 = vshrl.u32 %v454, 7
  %v456 = vsub.s32 0, %v455
  %v457 = vrot.slane %v452, %v456
  %459 = vmatprep.subr.mxu0 0.0
  %460 = vmatpush1.msra.mxu0 %v404
  %461 = vmatprep.subr.mxu0 0.0
  %462 = vmatpush1.msra.mxu0 %v405
  %463 = vmatprep.subr.mxu0 0.0
  %464 = vmatpush1.msra.mxu0 %v406
  %465 = vmatprep.subr.mxu0 0.0
  %466 = vmatpush1.msra.mxu0 %v407
  %467 = vmatprep.subr.mxu0 0.0
  %468 = vmatpush1.msra.mxu0 %v408
  %469 = vmatprep.subr.mxu0 0.0
  %470 = vmatpush1.msra.mxu0 %v409
  %471 = vmatprep.subr.mxu0 0.0
  %472 = vmatpush1.msra.mxu0 %v410
  %473 = vmatprep.subr.mxu0 0.0
  %474 = vmatpush1.msra.mxu0 %v411
  %475 = vmatprep.subr.mxu0 0.0
  %476 = vmatpush1.msra.mxu0 %v412
  %477 = vmatprep.subr.mxu0 0.0
  %478 = vmatpush1.msra.mxu0 %v413
  %479 = vmatprep.subr.mxu0 0.0
  %480 = vmatpush1.msra.mxu0 %v414
  %481 = vmatprep.subr.mxu0 0.0
  %482 = vmatpush1.msra.mxu0 %v415
  %483 = vmatprep.subr.mxu0 0.0
  %484 = vmatpush1.msra.mxu0 %v416
  %485 = vmatprep.subr.mxu0 0.0
  %486 = vmatpush1.msra.mxu0 %v417
  %487 = vmatprep.subr.mxu0 0.0
  %488 = vmatpush1.msra.mxu0 %v418
  %489 = vmatprep.subr.mxu0 0.0
  %490 = vmatpush1.msra.mxu0 %v419
  %491 = vmatprep.subr.mxu0 0.0
  %492 = vmatpush1.msra.mxu0 %v420
  %493 = vmatprep.subr.mxu0 0.0
  %494 = vmatpush1.msra.mxu0 %v421
  %495 = vmatprep.subr.mxu0 0.0
  %496 = vmatpush1.msra.mxu0 %v422
  %497 = vmatprep.subr.mxu0 0.0
  %498 = vmatpush1.msra.mxu0 %v423
  %499 = vmatprep.subr.mxu0 0.0
  %500 = vmatpush1.msra.mxu0 %v424
  %501 = vmatprep.subr.mxu0 0.0
  %502 = vmatpush1.msra.mxu0 %v425
  %503 = vmatprep.subr.mxu0 0.0
  %504 = vmatpush1.msra.mxu0 %v426
  %505 = vmatprep.subr.mxu0 0.0
  %506 = vmatpush1.msra.mxu0 %v427
  %507 = vmatprep.subr.mxu0 0.0
  %508 = vmatpush1.msra.mxu0 %v428
  %509 = vmatprep.subr.mxu0 0.0
  %510 = vmatpush1.msra.mxu0 %v429
  %511 = vmatprep.subr.mxu0 0.0
  %512 = vmatpush1.msra.mxu0 %v430
  %513 = vmatprep.subr.mxu0 0.0
  %514 = vmatpush1.msra.mxu0 %v431
  %515 = vmatprep.subr.mxu0 0.0
  %516 = vmatpush1.msra.mxu0 %v432
  %517 = vmatprep.subr.mxu0 0.0
  %518 = vmatpush1.msra.mxu0 %v433
  %519 = vmatprep.subr.mxu0 0.0
  %520 = vmatpush1.msra.mxu0 %v434
  %521 = vmatprep.subr.mxu0 0.0
  %522 = vmatpush1.msra.mxu0 %v435
  %523 = vmatprep.mubr.f32.mxu0 %v364
  %524 = vmatmul.mubr.f32.gmra.mrb[0].mxu0 %v396
  %v525 = vpop.f32.mrb[0].mxu0
  %v526 = vadd.f32 %v457, %v525
  %v527 = vpop.f32.mrb[0].mxu0
  %528 = vmatprep.mubr.f32.mxu0 %v365
  %529 = vmatmul.mubr.f32.gmra.mrb[0].mxu0 %v397
  %v530 = vpop.f32.mrb[0].mxu0
  %v531 = vadd.f32 %v457, %v530
  %v532 = vpop.f32.mrb[0].mxu0
  %533 = vmatprep.mubr.f32.mxu0 %v366
  %534 = vmatmul.mubr.f32.gmra.mrb[0].mxu0 %v398
  %v535 = vpop.f32.mrb[0].mxu0
  %v536 = vadd.f32 %v457, %v535
  %v537 = vpop.f32.mrb[0].mxu0
  %538 = vmatprep.mubr.f32.mxu0 %v367
  %539 = vmatmul.mubr.f32.gmra.mrb[0].mxu0 %v399
  %v540 = vpop.f32.mrb[0].mxu0
  %v541 = vadd.f32 %v457, %v540
  %v542 = vpop.f32.mrb[0].mxu0
  %543 = vdwg.mxu0
  %544 = vmatprep.subr.mxu0 0.0
  %545 = vmatpush1.msra.mxu0 %v436
  %546 = vmatprep.subr.mxu0 0.0
  %547 = vmatpush1.msra.mxu0 %v437
  %548 = vmatprep.subr.mxu0 0.0
  %549 = vmatpush1.msra.mxu0 %v438
  %550 = vmatprep.subr.mxu0 0.0
  %551 = vmatpush1.msra.mxu0 %v439
  %552 = vmatprep.subr.mxu0 0.0
  %553 = vmatpush1.msra.mxu0 %v440
  %554 = vmatprep.subr.mxu0 0.0
  %555 = vmatpush1.msra.mxu0 %v441
  %556 = vmatprep.subr.mxu0 0.0
  %557 = vmatpush1.msra.mxu0 %v442
  %558 = vmatprep.subr.mxu0 0.0
  %559 = vmatpush1.msra.mxu0 %v443
  %560 = vmatprep.subr.mxu0 0.0
  %561 = vmatpush1.msra.mxu0 %v444
  %562 = vmatprep.subr.mxu0 0.0
  %563 = vmatpush1.msra.mxu0 %v445
  %564 = vmatprep.subr.mxu0 0.0
  %565 = vmatpush1.msra.mxu0 %v446
  %566 = vmatprep.subr.mxu0 0.0
  %567 = vmatpush1.msra.mxu0 %v447
  %568 = vmatprep.subr.mxu0 0.0
  %569 = vmatpush1.msra.mxu0 %v448
  %570 = vmatprep.subr.mxu0 0.0
  %571 = vmatpush1.msra.mxu0 %v449
  %572 = vmatprep.subr.mxu0 0.0
  %573 = vmatpush1.msra.mxu0 %v450
  %574 = vmatprep.subr.mxu0 0.0
  %575 = vmatpush1.msra.mxu0 %v451
  %576 = vmatprep.subr.mxu0 0.0
  %577 = vmatpush1.msra.mxu0 0.0
  %578 = vmatprep.subr.mxu0 0.0
  %579 = vmatpush1.msra.mxu0 0.0
  %580 = vmatprep.subr.mxu0 0.0
  %581 = vmatpush1.msra.mxu0 0.0
  %582 = vmatprep.subr.mxu0 0.0
  %583 = vmatpush1.msra.mxu0 0.0
  %584 = vmatprep.subr.mxu0 0.0
  %585 = vmatpush1.msra.mxu0 0.0
  %586 = vmatprep.subr.mxu0 0.0
  %587 = vmatpush1.msra.mxu0 0.0
  %588 = vmatprep.subr.mxu0 0.0
  %589 = vmatpush1.msra.mxu0 0.0
  %590 = vmatprep.subr.mxu0 0.0
  %591 = vmatpush1.msra.mxu0 0.0
  %592 = vmatprep.subr.mxu0 0.0
  %593 = vmatpush1.msra.mxu0 0.0
  %594 = vmatprep.subr.mxu0 0.0
  %595 = vmatpush1.msra.mxu0 0.0
  %596 = vmatprep.subr.mxu0 0.0
  %597 = vmatpush1.msra.mxu0 0.0
  %598 = vmatprep.subr.mxu0 0.0
  %599 = vmatpush1.msra.mxu0 0.0
  %600 = vmatprep.subr.mxu0 0.0
  %601 = vmatpush1.msra.mxu0 0.0
  %602 = vmatprep.subr.mxu0 0.0
  %603 = vmatpush1.msra.mxu0 0.0
  %604 = vmatprep.subr.mxu0 0.0
  %605 = vmatpush1.msra.mxu0 0.0
  %606 = vmatprep.subr.mxu0 0.0
  %607 = vmatpush1.msra.mxu0 0.0
  %608 = vmatprep.mubr.f32.mxu0 0.0
  %609 = vmatmul.mubr.f32.gmra.mrb[0].mxu0 %v400
  %v610 = vpop.f32.mrb[0].mxu0
  %v611 = vadd.f32 %v526, %v610
  %v612 = vpop.f32.mrb[0].mxu0
  %613 = vmatprep.mubr.f32.mxu0 0.0
  %614 = vmatmul.mubr.f32.gmra.mrb[0].mxu0 %v401
  %v615 = vpop.f32.mrb[0].mxu0
  %v616 = vadd.f32 %v531, %v615
  %v617 = vpop.f32.mrb[0].mxu0
  %618 = vmatprep.mubr.f32.mxu0 0.0
  %619 = vmatmul.mubr.f32.gmra.mrb[0].mxu0 %v402
  %v620 = vpop.f32.mrb[0].mxu0
  %v621 = vadd.f32 %v536, %v620
  %v622 = vpop.f32.mrb[0].mxu0
  %623 = vmatprep.mubr.f32.mxu0 0.0
  %624 = vmatmul.mubr.f32.gmra.mrb[0].mxu0 %v403
  %v625 = vpop.f32.mrb[0].mxu0
  %v626 = vadd.f32 %v541, %v625
  %v627 = vpop.f32.mrb[0].mxu0
  %628 = vdwg.mxu0
  %v629 = vadd.f32 %v611, %v20
  %v630 = vadd.f32 %v616, %v21
  %v631 = vadd.f32 %v621, %v22
  %v632 = vadd.f32 %v626, %v23
  %633 = vst [vmem:[%s5] sm:$0xff] %v629
  %634 = vst [vmem:[%s5 + $0x8] sm:$0xff] %v630
  %635 = vst [vmem:[%s5 + $0x10] sm:$0xff] %v631
  %636 = vst [vmem:[%s5 + $0x18] sm:$0xff] %v632
  // Predicated region
  $region22: #{resblock_forward.1} parent=0 // pred_check
    _
  $region23: #{resblock_forward.1} parent=0 // pred_check_branch
    %638 = sbr.rel (0) target = $region25
  $region24: #{resblock_forward.1} parent=0 // pred_region
    _
  $region25: #{resblock_forward.1} parent=0 // pred_fallthru
    _
  // Predicated region
  $region26: #{resblock_forward.1} parent=0 // pred_check
    _
  $region27: #{resblock_forward.1} parent=0 // pred_check_branch
    %640 = sbr.rel (0) target = $region29
  $region28: #{resblock_forward.1} parent=0 // pred_region
    _
  $region29: #{resblock_forward.1} parent=0 // pred_fallthru
    _

</llo_original>
